<compile_context>
chip_gen: v7x
topology: tpu7x:2x2x1
jax: 0.10.0
libtpu: 0.0.40
codegen_flags: <defaults>
</compile_context>

<pallas_src>
import math

import jax
import jax.numpy as jnp
from jax.experimental import pallas as pl
from jax.experimental.pallas import tpu as pltpu


# ----------------------------- kernel ---------------------------------------
def _t_softmax_kernel(t_ref, x_ref, o_ref):
    t = t_ref[0, 0]                                   # scalar temperature >= 0
    x = x_ref[...].astype(jnp.float32)                # (BR, N)

    maxes = jnp.max(x, axis=-1, keepdims=True)        # lane (XLU) reduce
    xm = x - maxes                                    # <= 0
    w = jnp.maximum(xm + t, 0.0) + 1e-8               # relu(xm + t) + eps

    # softmax(xm + log w) == (exp(xm) * w) / sum(exp(xm) * w)
    # single EUP exp pass, no log, no second row-max.
    e = jnp.exp(xm) * w
    denom = jnp.sum(e, axis=-1, keepdims=True)        # strictly positive

    inv = pl.reciprocal(denom, approx=True)           # EUP slot
    inv = inv * (2.0 - denom * inv)                   # 1 Newton step on (BR,1)
    o_ref[...] = (e * inv).astype(o_ref.dtype)


# --------------------------- block sizing ------------------------------------
def _vmem_sizing():
    """Per-generation VMEM limit and block budget (bytes), at trace time."""
    cap = None
    try:
        info = pltpu.get_tpu_info()
        cap = int(getattr(info, "vmem_capacity_bytes", 0)) or None
    except Exception:
        cap = None
    if cap is None:
        cap = 64 * 1024 * 1024          # conservative: v7x per-TC; v5e/v6e = 128 MiB
    vmem_limit = (3 * cap) // 4         # 96 MiB on v5e/v6e, 48 MiB on v7x
    block_budget = int(vmem_limit * 0.8)  # headroom for compiler temps/scratch
    return vmem_limit, block_budget


def _pick_block_rows(rows: int, n: int, in_itemsize: int, out_itemsize: int,
                     block_budget: int) -> int:
    """Largest row block that fits the budget; 0 means 'does not fit'."""
    # sublane packing of the narrowest dtype actually DMA'd (f32:8, bf16:16, i8:32)
    pack = max(8, 32 // in_itemsize, 32 // out_itemsize)
    # residency per row: 2x dbl-buffered in + 2x dbl-buffered out + ~2.5 f32 temps
    per_row = n * (2 * in_itemsize + 2 * out_itemsize + 10)
    cap = block_budget // max(per_row, 1)
    if cap < min(rows, pack):
        return 0                                       # caller falls back to XLA
    if rows <= pack:
        return rows                                    # block == full row extent
    # keep >= 2 grid steps so the "parallel" row axis shards across both
    # TensorCores on v7x (an extra ~0.35us step is noise on v5e/v6e).
    target = pl.cdiv(rows, 2)
    target = pl.cdiv(target, pack) * pack
    br = min(cap, target)
    br = max(pack, (br // pack) * pack)
    return br


# ----------------------------- wrapper ---------------------------------------
def t_softmax_pallas(x: jax.Array, t=None, dim: int = -1,
                     *, block_rows: int | None = None) -> jax.Array:
    """TSoftmax forward: softmax((x - max) + log(relu(x - max + t) + 1e-8))."""
    if t is None:
        t = 0.5
    # TODO(synk): only scalar `t` is supported (matches the torch.tensor(0.5)
    # usage); a per-element t would need a second blocked input.  The torch
    # runtime assert (t >= 0).all() is skipped on traced values.
    t_arr = jnp.asarray(t, jnp.float32).reshape(1, 1)

    if dim != -1 and dim != x.ndim - 1:
        x_moved = jnp.moveaxis(x, dim, -1)
        out = t_softmax_pallas(x_moved, t, -1, block_rows=block_rows)
        return jnp.moveaxis(out, -1, dim)

    orig_shape = x.shape
    n = orig_shape[-1]
    rows = int(math.prod(orig_shape[:-1]))
    x2 = x.reshape(rows, n)

    vmem_limit, block_budget = _vmem_sizing()
    in_isz = jnp.dtype(x.dtype).itemsize
    out_isz = in_isz
    br = _pick_block_rows(rows, n, in_isz, out_isz, block_budget)
    if block_rows is not None and br > 0:
        br = max(min(br, block_rows), min(rows, 8))

    if br == 0:
        # TODO(synk): very large N needs a split-N / online-softmax kernel;
        # fall back to XLA instead of a compile-time VMEM OOM.
        return t_softmax_ref(x, t_arr[0, 0], dim=-1).astype(x.dtype)

    grid = (pl.cdiv(rows, br),)   # ragged last block: writeback is masked

    out2 = pl.pallas_call(
        _t_softmax_kernel,
        out_shape=jax.ShapeDtypeStruct((rows, n), x.dtype),
        grid=grid,
        in_specs=[
            pl.BlockSpec(memory_space=pltpu.MemorySpace.SMEM),   # scalar t
            pl.BlockSpec((br, n), lambda i: (i, 0)),             # x row block
        ],
        out_specs=pl.BlockSpec((br, n), lambda i: (i, 0)),
        compiler_params=pltpu.CompilerParams(
            dimension_semantics=("parallel",),
            vmem_limit_bytes=int(vmem_limit),
        ),
    )(t_arr, x2)

    return out2.reshape(orig_shape)


# ---------------- pure-JAX reference (direct torch translation) --------------
def t_softmax_ref(x, t, dim: int = -1):
    x = x.astype(jnp.float32)
    maxes = jnp.max(x, axis=dim, keepdims=True)
    xm = x - maxes
    w = jnp.maximum(xm + t, 0.0) + 1e-8
    return jax.nn.softmax(xm + jnp.log(w), axis=dim)


if __name__ == "__main__":
    key = jax.random.PRNGKey(0)
    B, C, H, W = 2, 4, 16, 16
    x = jax.random.normal(key, (B, C, H, W), dtype=jnp.float32) * 3.0
    t = jnp.float32(0.5)

    out = jax.block_until_ready(t_softmax_pallas(x, t))   # softmax over dim=-1

    ref = t_softmax_ref(x, t)
    assert out.shape == (B, C, H, W) and out.dtype == jnp.float32
    assert jnp.allclose(out, ref, atol=1e-5, rtol=1e-5), (
        f"max abs err = {jnp.max(jnp.abs(out - ref))}")
    # rows of a softmax sum to 1
    assert jnp.allclose(jnp.sum(out, axis=-1), 1.0, atol=1e-5)

    print("KERNEL_OK")
</pallas_src>

<mosaic_0001>
module attributes {stable_mosaic.version = 11 : i64} {
  func.func @_t_softmax_kernel(%arg0: i32, %arg1: memref<1x1xf32, #tpu.memory_space<smem>>, %arg2: memref<64x16xf32, #tpu.memory_space<vmem>>, %arg3: memref<64x16xf32, #tpu.memory_space<vmem>>) attributes {dimension_semantics = [#tpu.dimension_semantics<parallel>], iteration_bounds = array<i64: 2>, scalar_prefetch = 0 : i64, scratch_operands = 0 : i64, tpu.core_type = #tpu.core_type<tc>, window_params = [{transform_indices = @transform_0, window_bounds = array<i64: 1, 1>}, {transform_indices = @transform_1, window_bounds = array<i64: 64, 16>}, {transform_indices = @transform_2, window_bounds = array<i64: 64, 16>}]} {
    %c0 = arith.constant 0 : index
    %c0_0 = arith.constant 0 : index
    %0 = memref.load %arg1[%c0, %c0_0] : memref<1x1xf32, #tpu.memory_space<smem>>
    %c0_1 = arith.constant 0 : index
    %c0_2 = arith.constant 0 : index
    %1 = vector.load %arg2[%c0_1, %c0_2] : memref<64x16xf32, #tpu.memory_space<vmem>>, vector<64x16xf32>
    %cst = arith.constant dense<0xFF800000> : vector<64xf32>
    %2 = vector.multi_reduction <maximumf>, %1, %cst [1] : vector<64x16xf32> to vector<64xf32>
    %3 = vector.shape_cast %2 : vector<64xf32> to vector<64x1xf32>
    %4 = vector.broadcast %3 : vector<64x1xf32> to vector<64x16xf32>
    %5 = arith.subf %1, %4 : vector<64x16xf32>
    %6 = vector.broadcast %0 : f32 to vector<64x16xf32>
    %7 = arith.addf %5, %6 : vector<64x16xf32>
    %cst_3 = arith.constant 0.000000e+00 : f32
    %8 = vector.broadcast %cst_3 : f32 to vector<64x16xf32>
    %9 = arith.maximumf %7, %8 : vector<64x16xf32>
    %cst_4 = arith.constant 9.99999993E-9 : f32
    %10 = vector.broadcast %cst_4 : f32 to vector<64x16xf32>
    %11 = arith.addf %9, %10 : vector<64x16xf32>
    %12 = math.exp %5 : vector<64x16xf32>
    %13 = arith.mulf %12, %11 : vector<64x16xf32>
    %cst_5 = arith.constant dense<0.000000e+00> : vector<64xf32>
    %14 = vector.multi_reduction <add>, %13, %cst_5 [1] : vector<64x16xf32> to vector<64xf32>
    %15 = vector.shape_cast %14 : vector<64xf32> to vector<64x1xf32>
    %16 = tpu.reciprocal %15 {approx = true} : vector<64x1xf32> -> vector<64x1xf32>
    %17 = arith.mulf %15, %16 : vector<64x1xf32>
    %cst_6 = arith.constant 2.000000e+00 : f32
    %18 = vector.broadcast %cst_6 : f32 to vector<64x1xf32>
    %19 = arith.subf %18, %17 : vector<64x1xf32>
    %20 = arith.mulf %16, %19 : vector<64x1xf32>
    %21 = vector.broadcast %20 : vector<64x1xf32> to vector<64x16xf32>
    %22 = arith.mulf %13, %21 : vector<64x16xf32>
    %c0_7 = arith.constant 0 : index
    %c0_8 = arith.constant 0 : index
    %23 = vector.load %arg3[%c0_7, %c0_8] : memref<64x16xf32, #tpu.memory_space<vmem>>, vector<64x16xf32>
    tpu.vector_store %arg3[%c0_7, %c0_8], %22 {strides = array<i32>} : memref<64x16xf32, #tpu.memory_space<vmem>>, vector<64x16xf32>,
    return
  }
  func.func @transform_0(%arg0: i32) -> (i32, i32) {
    %c0_i32 = arith.constant 0 : i32
    %c0_i32_0 = arith.constant 0 : i32
    %c0_i32_1 = arith.constant 0 : i32
    return %c0_i32, %c0_i32_0 : i32, i32
  }
  func.func @transform_1(%arg0: i32) -> (i32, i32) {
    %c0_i32 = arith.constant 0 : i32
    %c0_i32_0 = arith.constant 0 : i32
    return %arg0, %c0_i32 : i32, i32
  }
  func.func @transform_2(%arg0: i32) -> (i32, i32) {
    %c0_i32 = arith.constant 0 : i32
    %c0_i32_0 = arith.constant 0 : i32
    return %arg0, %c0_i32 : i32, i32
  }
}

</mosaic_0001>

<llo_original>
// kernel: tpu_custom_call.1
$region0: #{tpu_custom_call.1}
  #allocation0 [shape = 'u32[]', space=smem, size = 0x4, offset = 0x4, fixed_abs, tag = 'smem constant byte address 0x4 - core index']
  #allocation1 [shape = 'u32[144,128]{1,0:T(1,128)}', space=vmem, size = 0x12000, scoped, tag = 'internal scratch']
  #allocation2 [shape = 'f32[1,1]{1,0:T(1,128)S(6)}', space=smem, size = 0x200, scoped, tag = 'scoped memory for tpu_custom_call.1']
  %s0 = inlined_call_operand.<no memory space> [shape: f32[1,1], index: 0, kind: input, shape index: {}]
  %s1 = inlined_call_operand.vmem [shape: f32[128,16], index: 1, kind: input, shape index: {}]
  %s2 = inlined_call_operand.vmem [shape: f32[128,16], index: 2, kind: output, shape index: {}]
  %s3 = sld [smem:[#allocation0]]
  $region41: #{tpu_custom_call.1} parent=0
    _
  %s5 = ssub.s32 1, %s3
  %s6 = scalar_select 0, %s5, %s3
  %7 = sst [smem:[#allocation2]] %s0
  loop: start=0, step=1, limit=4
  $region2: #{tpu_custom_call.1} parent=0 // loop_pre_header
    _
  $region3: #{tpu_custom_call.1} parent=0 // loop_header
    %s9 = sphi 0, %s13
    %p10 = scmp.ge.s32.totalorder %s9, 4
    %s17 = sphi 0, %s17
    %s19 = sphi 0, %s17
    %s20 = sphi 0, %s19
    %s34 = sphi 0, %s20
    %s40 = sphi 0, %s42
    %s43 = sphi 0, %s40
    %s44 = sphi 0, %s43
    %s60 = sphi 0, %s44
    %s66 = sphi 0, %s68
    %s69 = sphi 0, %s66
    %s70 = sphi 0, %s69
    %s86 = sphi 0, %s70
  $region4: #{tpu_custom_call.1} parent=0 // loop_header_branch
    %12 = sbr.rel (%p10) target = $region8
  $region5: #{tpu_custom_call.1} parent=0 // loop_body
    %s14 = ssub.s32 %s9, 1
    %s15 = ssub.s32 %s9, 2
    %s16 = sadd.s32 %s9, 1
    %s18 = sadd.s32 %s17, 1
    %p21 = scmp.eq.s32.totalorder %s9, 1
    %p22 = scmp.ne.s32.totalorder %s17, %s19
    %p23 = scmp.eq.s32.totalorder %s9, 0
    %p24 = por %p22, %p23
    %p25 = scmp.ne.s32.totalorder %s17, %s19
    %p26 = scmp.eq.s32.totalorder %s14, 1
    %p27 = por %p25, %p26
    %p28 = scmp.ne.s32.totalorder %s19, %s20
    %p29 = scmp.eq.s32.totalorder %s14, 0
    %p30 = por %p28, %p29
    %p31 = scmp.ne.s32.totalorder %s19, %s20
    %p32 = scmp.eq.s32.totalorder %s15, 1
    %p33 = por %p31, %p32
    %p35 = scmp.ne.s32.totalorder %s20, %s34
    %p36 = scmp.eq.s32.totalorder %s15, 0
    %p37 = por %p35, %p36
    %s38 = ssub.s32 %s9, %s16
    %p39 = scmp.eq.s32.totalorder %s38, 0
    %s41 = sadd.s32 %s40, 1
    %s42 = scalar_select %p39, %s40, %s41
    %p45 = pneg %p39
    %p46 = scmp.eq.s32.totalorder %s9, 1
    %p47 = por %p45, %p46
    %p48 = scmp.ne.s32.totalorder %s40, %s43
    %p49 = scmp.eq.s32.totalorder %s9, 0
    %p50 = por %p48, %p49
    %p51 = scmp.ne.s32.totalorder %s40, %s43
    %p52 = scmp.eq.s32.totalorder %s14, 1
    %p53 = por %p51, %p52
    %p54 = scmp.ne.s32.totalorder %s43, %s44
    %p55 = scmp.eq.s32.totalorder %s14, 0
    %p56 = por %p54, %p55
    %p57 = scmp.ne.s32.totalorder %s43, %s44
    %p58 = scmp.eq.s32.totalorder %s15, 1
    %p59 = por %p57, %p58
    %p61 = scmp.ne.s32.totalorder %s44, %s60
    %p62 = scmp.eq.s32.totalorder %s15, 0
    %p63 = por %p61, %p62
    %s64 = ssub.s32 %s9, %s16
    %p65 = scmp.eq.s32.totalorder %s64, 0
    %s67 = sadd.s32 %s66, 1
    %s68 = scalar_select %p65, %s66, %s67
    %p71 = pneg %p65
    %p72 = scmp.eq.s32.totalorder %s9, 1
    %p73 = por %p71, %p72
    %p74 = scmp.ne.s32.totalorder %s66, %s69
    %p75 = scmp.eq.s32.totalorder %s9, 0
    %p76 = por %p74, %p75
    %p77 = scmp.ne.s32.totalorder %s66, %s69
    %p78 = scmp.eq.s32.totalorder %s14, 1
    %p79 = por %p77, %p78
    %p80 = scmp.ne.s32.totalorder %s69, %s70
    %p81 = scmp.eq.s32.totalorder %s14, 0
    %p82 = por %p80, %p81
    %p83 = scmp.ne.s32.totalorder %s69, %s70
    %p84 = scmp.eq.s32.totalorder %s15, 1
    %p85 = por %p83, %p84
    %p87 = scmp.ne.s32.totalorder %s70, %s86
    %p88 = scmp.eq.s32.totalorder %s15, 0
    %p89 = por %p87, %p88
    %p90 = scmp.le.s32.totalorder 1, %s9
    %p91 = scmp.lt.s32.totalorder %s9, 3
    %p92 = pnand %p90, %p91
    %p93 = pneg %p92
    // Predicated region
    $region9: #{tpu_custom_call.1} parent=5 // pred_check
      _
    $region10: #{tpu_custom_call.1} parent=5 // pred_check_branch
      %95 = sbr.rel (%p92) target = $region12
    $region11: #{tpu_custom_call.1} parent=5 // pred_region
      %s96 = ssub.s32 %s9, 1
      // Predicated region
      $region13: #{tpu_custom_call.1} parent=11 // pred_check
        %p97 = pneg %p30
      $region14: #{tpu_custom_call.1} parent=11 // pred_check_branch
        %99 = sbr.rel (%p97) target = $region16
      $region15: #{tpu_custom_call.1} parent=11 // pred_region
        _
      $region16: #{tpu_custom_call.1} parent=11 // pred_fallthru
        _
    $region12: #{tpu_custom_call.1} parent=5 // pred_fallthru
      _
    %p100 = scmp.lt.s32.totalorder %s9, 2
    // Predicated region
    $region17: #{tpu_custom_call.1} parent=5 // pred_check
      %p101 = pneg %p100
    $region18: #{tpu_custom_call.1} parent=5 // pred_check_branch
      %103 = sbr.rel (%p101) target = $region20
    $region19: #{tpu_custom_call.1} parent=5 // pred_region
      // Predicated region
      $region21: #{tpu_custom_call.1} parent=19 // pred_check
        %p104 = pneg %p50
      $region22: #{tpu_custom_call.1} parent=19 // pred_check_branch
        %106 = sbr.rel (%p104) target = $region24
      $region23: #{tpu_custom_call.1} parent=19 // pred_region
        %s107 = smul.u32 8, %s9
        %p108 = scmp.lt.s32.totalorder %s107, 15
        %s109 = scalar_select %p108, %s107, 15
        %s110 = smul.addr %s109, 8
        %s111 = scalar_lea.vmem %s1, %s110
        %s112 = smul.u32 8, %s9
      $region24: #{tpu_custom_call.1} parent=19 // pred_fallthru
        _
    $region20: #{tpu_custom_call.1} parent=5 // pred_fallthru
      _
    %p113 = scmp.le.s32.totalorder 1, %s9
    %p114 = scmp.lt.s32.totalorder %s9, 3
    %p115 = pnand %p113, %p114
    %p116 = pneg %p115
    // Predicated region
    $region25: #{tpu_custom_call.1} parent=5 // pred_check
      _
    $region26: #{tpu_custom_call.1} parent=5 // pred_check_branch
      %118 = sbr.rel (%p115) target = $region28
    $region27: #{tpu_custom_call.1} parent=5 // pred_region
      %s119 = ssub.s32 %s9, 1
      %p120 = pneg %p30
      %p121 = pneg %p27
      %s122 = smul.u32 8, %s14
      %p123 = scmp.lt.s32.totalorder %s122, 15
      %s124 = scalar_select %p123, %s122, 15
      %s125 = smul.addr %s124, 8
      %s126 = scalar_lea.vmem %s1, %s125
      %p127 = pneg %p56
      %p128 = pneg %p53
      %p129 = pneg %p82
      %p130 = pneg %p79
      %s131 = smul.u32 8, %s14
      %p132 = scmp.lt.s32.totalorder %s131, 15
      %s133 = scalar_select %p132, %s131, 15
      %s134 = smul.addr %s133, 8
      %s135 = scalar_lea.vmem %s2, %s134
      %s136 = smul.u32 8, %s14
      %p137 = scmp.lt.s32.totalorder %s136, 15
      %s138 = scalar_select %p137, %s136, 15
      %s139 = smul.addr %s138, 8
      %s140 = scalar_lea.vmem %s1, %s139
      %s141 = smul.u32 8, %s14
      %s142 = smul.u32 8, %s14
      %p143 = scmp.lt.s32.totalorder %s142, 15
      %s144 = scalar_select %p143, %s142, 15
      %s145 = smul.addr %s144, 8
      %s146 = scalar_lea.vmem %s2, %s145
      %s147 = smul.u32 8, %s14
      %s148 = sld [smem:[#allocation2]]
      %v149 = vld [vmem:[%s140] sm:$0xff]
      %v150 = vld [vmem:[%s140 + $0x8] sm:$0xff]
      %v151 = vld [vmem:[%s140 + $0x10] sm:$0xff]
      %v152 = vld [vmem:[%s140 + $0x18] sm:$0xff]
      %v153 = vld [vmem:[%s140 + $0x20] sm:$0xff]
      %v154 = vld [vmem:[%s140 + $0x28] sm:$0xff]
      %v155 = vld [vmem:[%s140 + $0x30] sm:$0xff]
      %v156 = vld [vmem:[%s140 + $0x38] sm:$0xff]
      %vm157 = vcmask 130048
      %v158 = vsel %vm157, %v149, -inf
      %159 = vmax.xlane.f32.xlu0 %v158
      %v160 = vpop.xlane.xlu0 %159
      %v161 = vsel %vm157, %v150, -inf
      %162 = vmax.xlane.f32.xlu0 %v161
      %v163 = vpop.xlane.xlu0 %162
      %v164 = vsel %vm157, %v151, -inf
      %165 = vmax.xlane.f32.xlu0 %v164
      %v166 = vpop.xlane.xlu0 %165
      %v167 = vsel %vm157, %v152, -inf
      %168 = vmax.xlane.f32.xlu0 %v167
      %v169 = vpop.xlane.xlu0 %168
      %v170 = vsel %vm157, %v153, -inf
      %171 = vmax.xlane.f32.xlu0 %v170
      %v172 = vpop.xlane.xlu0 %171
      %v173 = vsel %vm157, %v154, -inf
      %174 = vmax.xlane.f32.xlu0 %v173
      %v175 = vpop.xlane.xlu0 %174
      %v176 = vsel %vm157, %v155, -inf
      %177 = vmax.xlane.f32.xlu0 %v176
      %v178 = vpop.xlane.xlu0 %177
      %v179 = vsel %vm157, %v156, -inf
      %180 = vmax.xlane.f32.xlu0 %v179
      %v181 = vpop.xlane.xlu0 %180
      %v182 = vsub.f32 %v149, %v160
      %v183 = vsub.f32 %v150, %v163
      %v184 = vsub.f32 %v151, %v166
      %v185 = vsub.f32 %v152, %v169
      %v186 = vsub.f32 %v153, %v172
      %v187 = vsub.f32 %v154, %v175
      %v188 = vsub.f32 %v155, %v178
      %v189 = vsub.f32 %v156, %v181
      %v190 = vstv %s148
      %v191 = vadd.f32 %v182, %v190
      %v192 = vadd.f32 %v183, %v190
      %v193 = vadd.f32 %v184, %v190
      %v194 = vadd.f32 %v185, %v190
      %v195 = vadd.f32 %v186, %v190
      %v196 = vadd.f32 %v187, %v190
      %v197 = vadd.f32 %v188, %v190
      %v198 = vadd.f32 %v189, %v190
      %v199 = vmax.f32 %v191, 0.0
      %v200 = vmax.f32 %v192, 0.0
      %v201 = vmax.f32 %v193, 0.0
      %v202 = vmax.f32 %v194, 0.0
      %v203 = vmax.f32 %v195, 0.0
      %v204 = vmax.f32 %v196, 0.0
      %v205 = vmax.f32 %v197, 0.0
      %v206 = vmax.f32 %v198, 0.0
      %v207 = vadd.f32 %v199, 1e-08
      %v208 = vadd.f32 %v200, 1e-08
      %v209 = vadd.f32 %v201, 1e-08
      %v210 = vadd.f32 %v202, 1e-08
      %v211 = vadd.f32 %v203, 1e-08
      %v212 = vadd.f32 %v204, 1e-08
      %v213 = vadd.f32 %v205, 1e-08
      %v214 = vadd.f32 %v206, 1e-08
      %v215 = vmul.f32 %v182, 1.442695
      %v216 = vpow.pop %v215
      %v217 = vmul.f32 %v183, 1.442695
      %v218 = vpow.pop %v217
      %v219 = vmul.f32 %v184, 1.442695
      %v220 = vpow.pop %v219
      %v221 = vmul.f32 %v185, 1.442695
      %v222 = vpow.pop %v221
      %v223 = vmul.f32 %v186, 1.442695
      %v224 = vpow.pop %v223
      %v225 = vmul.f32 %v187, 1.442695
      %v226 = vpow.pop %v225
      %v227 = vmul.f32 %v188, 1.442695
      %v228 = vpow.pop %v227
      %v229 = vmul.f32 %v189, 1.442695
      %v230 = vpow.pop %v229
      %v231 = vmul.f32 %v216, %v207
      %v232 = vmul.f32 %v218, %v208
      %v233 = vmul.f32 %v220, %v209
      %v234 = vmul.f32 %v222, %v210
      %v235 = vmul.f32 %v224, %v211
      %v236 = vmul.f32 %v226, %v212
      %v237 = vmul.f32 %v228, %v213
      %v238 = vmul.f32 %v230, %v214
      %v239 = vsel %vm157, %v231, 0.0
      %240 = vadd.xlane.f32.xlu0 %v239
      %v241 = vpop.xlane.xlu0 %240
      %v242 = vsel %vm157, %v232, 0.0
      %243 = vadd.xlane.f32.xlu0 %v242
      %v244 = vpop.xlane.xlu0 %243
      %v245 = vsel %vm157, %v233, 0.0
      %246 = vadd.xlane.f32.xlu0 %v245
      %v247 = vpop.xlane.xlu0 %246
      %v248 = vsel %vm157, %v234, 0.0
      %249 = vadd.xlane.f32.xlu0 %v248
      %v250 = vpop.xlane.xlu0 %249
      %v251 = vsel %vm157, %v235, 0.0
      %252 = vadd.xlane.f32.xlu0 %v251
      %v253 = vpop.xlane.xlu0 %252
      %v254 = vsel %vm157, %v236, 0.0
      %255 = vadd.xlane.f32.xlu0 %v254
      %v256 = vpop.xlane.xlu0 %255
      %v257 = vsel %vm157, %v237, 0.0
      %258 = vadd.xlane.f32.xlu0 %v257
      %v259 = vpop.xlane.xlu0 %258
      %v260 = vsel %vm157, %v238, 0.0
      %261 = vadd.xlane.f32.xlu0 %v260
      %v262 = vpop.xlane.xlu0 %261
      %v263 = vrcp.pop %v241
      %v264 = vrcp.pop %v244
      %v265 = vrcp.pop %v247
      %v266 = vrcp.pop %v250
      %v267 = vrcp.pop %v253
      %v268 = vrcp.pop %v256
      %v269 = vrcp.pop %v259
      %v270 = vrcp.pop %v262
      %v271 = vmul.f32 %v241, %v263
      %v272 = vmul.f32 %v244, %v264
      %v273 = vmul.f32 %v247, %v265
      %v274 = vmul.f32 %v250, %v266
      %v275 = vmul.f32 %v253, %v267
      %v276 = vmul.f32 %v256, %v268
      %v277 = vmul.f32 %v259, %v269
      %v278 = vmul.f32 %v262, %v270
      %v279 = vsub.f32 2.0, %v271
      %v280 = vsub.f32 2.0, %v272
      %v281 = vsub.f32 2.0, %v273
      %v282 = vsub.f32 2.0, %v274
      %v283 = vsub.f32 2.0, %v275
      %v284 = vsub.f32 2.0, %v276
      %v285 = vsub.f32 2.0, %v277
      %v286 = vsub.f32 2.0, %v278
      %v287 = vmul.f32 %v263, %v279
      %v288 = vmul.f32 %v264, %v280
      %v289 = vmul.f32 %v265, %v281
      %v290 = vmul.f32 %v266, %v282
      %v291 = vmul.f32 %v267, %v283
      %v292 = vmul.f32 %v268, %v284
      %v293 = vmul.f32 %v269, %v285
      %v294 = vmul.f32 %v270, %v286
      %v295 = vmul.f32 %v231, %v287
      %v296 = vmul.f32 %v232, %v288
      %v297 = vmul.f32 %v233, %v289
      %v298 = vmul.f32 %v234, %v290
      %v299 = vmul.f32 %v235, %v291
      %v300 = vmul.f32 %v236, %v292
      %v301 = vmul.f32 %v237, %v293
      %v302 = vmul.f32 %v238, %v294
      %303 = vst.msk [vmem:[%s146] sm:$0xff] %vm157, %v295
      %304 = vst.msk [vmem:[%s146 + $0x8] sm:$0xff] %vm157, %v296
      %305 = vst.msk [vmem:[%s146 + $0x10] sm:$0xff] %vm157, %v297
      %306 = vst.msk [vmem:[%s146 + $0x18] sm:$0xff] %vm157, %v298
      %307 = vst.msk [vmem:[%s146 + $0x20] sm:$0xff] %vm157, %v299
      %308 = vst.msk [vmem:[%s146 + $0x28] sm:$0xff] %vm157, %v300
      %309 = vst.msk [vmem:[%s146 + $0x30] sm:$0xff] %vm157, %v301
      %310 = vst.msk [vmem:[%s146 + $0x38] sm:$0xff] %vm157, %v302
      %s311 = smul.u32 8, %s14
      %p312 = scmp.lt.s32.totalorder %s311, 15
      %s313 = scalar_select %p312, %s311, 15
      %s314 = smul.addr %s313, 8
      %s315 = scalar_lea.vmem %s2, %s314
      // Predicated region
      $region29: #{tpu_custom_call.1} parent=27 // pred_check
        %p316 = pneg %p79
      $region30: #{tpu_custom_call.1} parent=27 // pred_check_branch
        %318 = sbr.rel (%p316) target = $region32
      $region31: #{tpu_custom_call.1} parent=27 // pred_region
        %s319 = smul.u32 8, %s14
      $region32: #{tpu_custom_call.1} parent=27 // pred_fallthru
        _
    $region28: #{tpu_custom_call.1} parent=5 // pred_fallthru
      _
    %p320 = scmp.le.s32.totalorder 2, %s9
    // Predicated region
    $region33: #{tpu_custom_call.1} parent=5 // pred_check
      %p321 = pneg %p320
    $region34: #{tpu_custom_call.1} parent=5 // pred_check_branch
      %323 = sbr.rel (%p321) target = $region36
    $region35: #{tpu_custom_call.1} parent=5 // pred_region
      %s324 = ssub.s32 %s9, 2
      // Predicated region
      $region37: #{tpu_custom_call.1} parent=35 // pred_check
        %p325 = pneg %p85
      $region38: #{tpu_custom_call.1} parent=35 // pred_check_branch
        %327 = sbr.rel (%p325) target = $region40
      $region39: #{tpu_custom_call.1} parent=35 // pred_region
        %s328 = smul.u32 8, %s15
        %p329 = scmp.lt.s32.totalorder %s328, 15
        %s330 = scalar_select %p329, %s328, 15
        %s331 = smul.addr %s330, 8
        %s332 = scalar_lea.vmem %s2, %s331
      $region40: #{tpu_custom_call.1} parent=35 // pred_fallthru
        _
    $region36: #{tpu_custom_call.1} parent=5 // pred_fallthru
      _
  $region6: #{tpu_custom_call.1} parent=0 // loop_footer
    %s13 = sadd.s32 1, %s9
  $region7: #{tpu_custom_call.1} parent=0 // loop_footer_branch
    %8 = sbr.rel target = $region3
  $region8: #{tpu_custom_call.1} parent=0 // loop_exit
    _

</llo_original>
